<compile_context>
chip_gen: v6e
topology: v6e:2x2x1
jax: 0.10.0
libtpu: 0.0.40
codegen_flags: <defaults>
</compile_context>

<pallas_src>
import numpy as np
import jax
import jax.numpy as jnp
from jax import lax
from jax.experimental import pallas as pl
from jax.experimental.pallas import tpu as pltpu

B, S, H, NL, VOCAB = 2, 16, 128, 2, 256
CLS_TOKEN = 101


def segment_predictor_loss(x_emb, cls_idx, labels_t, turn_nums,
                           W_enc, b_enc, W_cls, b_cls):
    Bn, Sn, Hn = x_emb.shape
    T = cls_idx.shape[1]
    BT, BS = Bn * T, Bn * Sn

    def kernel(x_ref, we_ref, be_ref, wct_ref, bc_ref,
               idx_ref, lab_ref, tn_ref, loss_ref):
        # ---- stand-in encoder layer (bf16 MXU inputs, f32 accumulate) ----
        h = jnp.tanh(
            jnp.dot(x_ref[...], we_ref[...],
                    preferred_element_type=jnp.float32) + be_ref[...])  # (BS,H) f32

        # ---- gather one-hot + per-turn sign/valid built from SMEM scalars ----
        row = lax.broadcasted_iota(jnp.int32, (BT, BS), 0)
        col = lax.broadcasted_iota(jnp.int32, (BT, BS), 1)
        rvec = lax.broadcasted_iota(jnp.int32, (BT, 1), 0)
        onehot = jnp.zeros((BT, BS), jnp.float32)
        sign = jnp.zeros((BT, 1), jnp.float32)
        valid = jnp.zeros((BT, 1), jnp.float32)
        for b in range(Bn):                      # static unroll: B*T is tiny
            for t in range(T):
                r = b * T + t
                # padded turns behave exactly like label = -1 (ignore_index)
                lab_eff = jnp.where(tn_ref[b] > t, lab_ref[b, t], -1)
                v = lab_eff >= 0
                pos = b * Sn + idx_ref[b, t]     # flat CLS position
                onehot = jnp.where((row == r) & (col == pos) & v, 1.0, onehot)
                sign = jnp.where(rvec == r,
                                 (1 - 2 * lab_eff).astype(jnp.float32), sign)
                valid = jnp.where((rvec == r) & v, 1.0, valid)

        # ---- gather CLS rows: sent_repr_mat (B*T, H) ----
        sent = jnp.dot(onehot, h, preferred_element_type=jnp.float32)

        # ---- binary classifier as a lane-dense logit margin ----
        wdiff = wct_ref[1:2, :] - wct_ref[0:1, :]            # (1, H): w1 - w0
        bdiff = bc_ref[1] - bc_ref[0]
        margin = jnp.sum(sent * wdiff, axis=-1, keepdims=True) + bdiff  # (BT,1)

        # 2-class cross entropy == softplus of the signed margin (stable form)
        z = sign * margin
        nll = jnp.maximum(z, 0.0) + jnp.log(1.0 + jnp.exp(-jnp.abs(z)))

        total = jnp.sum(nll * valid)
        count = jnp.sum(valid)
        # NOTE: count == 0 (every turn ignored) yields nan, matching
        # F.cross_entropy(..., ignore_index=-1, reduction='mean').
        loss_ref[0, 0] = total / count

    loss = pl.pallas_call(
        kernel,
        out_shape=jax.ShapeDtypeStruct((1, 1), jnp.float32),
        in_specs=[
            pl.BlockSpec(memory_space=pltpu.MemorySpace.VMEM),   # x (B*S, H) bf16
            pl.BlockSpec(memory_space=pltpu.MemorySpace.VMEM),   # W_enc bf16
            pl.BlockSpec(memory_space=pltpu.MemorySpace.VMEM),   # b_enc f32
            pl.BlockSpec(memory_space=pltpu.MemorySpace.VMEM),   # W_cls^T (NL,H) f32
            pl.BlockSpec(memory_space=pltpu.MemorySpace.SMEM),   # b_cls (NL,)
            pl.BlockSpec(memory_space=pltpu.MemorySpace.SMEM),   # cls_idx (B, T)
            pl.BlockSpec(memory_space=pltpu.MemorySpace.SMEM),   # labels (B, T)
            pl.BlockSpec(memory_space=pltpu.MemorySpace.SMEM),   # turn_nums (B,)
        ],
        out_specs=pl.BlockSpec(memory_space=pltpu.MemorySpace.SMEM),
    )(
        x_emb.reshape(BS, Hn).astype(jnp.bfloat16),
        W_enc.astype(jnp.bfloat16),
        b_enc.astype(jnp.float32),
        W_cls.T.astype(jnp.float32),            # (NL, H): H on the lane axis
        b_cls.reshape(NL).astype(jnp.float32),
        cls_idx.astype(jnp.int32),
        labels_t.astype(jnp.int32),
        turn_nums.astype(jnp.int32),
    )
    return loss[0, 0]


if __name__ == "__main__":
    key = jax.random.PRNGKey(0)
    k_e, k_p, k_we, k_be, k_wc, k_bc = jax.random.split(key, 6)

    # --- synthetic `data` dict: document token ids + segment labels ---
    cls_positions = [[0, 5, 10], [0, 8]]          # turn starts per example
    rng = np.random.RandomState(0)
    document = rng.randint(3, 90, size=(B, S)).astype(np.int32)
    for i, pos in enumerate(cls_positions):
        document[i, pos] = CLS_TOKEN
    segment_label = rng.randint(0, NL, size=(B, S)).astype(np.int32)

    turn_nums = np.array([(document[i] == CLS_TOKEN).sum() for i in range(B)],
                         dtype=np.int32)
    T = int(turn_nums.max())                       # max_turn_num
    cls_idx = np.zeros((B, T), dtype=np.int32)
    for i in range(B):
        p = np.nonzero(document[i] == CLS_TOKEN)[0]
        cls_idx[i, :len(p)] = p
    labels_t = segment_label[:, :T].astype(np.int32)  # segment_label[:, :max_turn_num]

    # --- deterministic parameters ---
    # TODO(synk): pretrained BertModel has no clean Pallas equivalent; replaced
    # by deterministic embedding lookup + one dense-tanh encoder layer.
    emb_tbl = jax.random.normal(k_e, (VOCAB, H), jnp.float32) * 0.02
    pos_tbl = jax.random.normal(k_p, (S, H), jnp.float32) * 0.02
    W_enc = jax.random.normal(k_we, (H, H), jnp.float32) / np.sqrt(H)
    b_enc = jax.random.normal(k_be, (1, H), jnp.float32) * 0.01
    W_cls = jax.random.normal(k_wc, (H, NL), jnp.float32) * 0.05
    b_cls = jax.random.normal(k_bc, (1, NL), jnp.float32) * 0.01

    x_emb = emb_tbl[jnp.asarray(document)] + pos_tbl[None, :, :]   # (B, S, H)

    loss = segment_predictor_loss(
        x_emb, jnp.asarray(cls_idx), jnp.asarray(labels_t),
        jnp.asarray(turn_nums), W_enc, b_enc, W_cls, b_cls)
    loss = jax.block_until_ready(loss)

    # --- pure-JAX reference mirroring the PyTorch forward semantics (same
    #     bf16-rounded encoder inputs, f32 math everywhere) ---
    x_bf = x_emb.astype(jnp.bfloat16).astype(jnp.float32)
    we_bf = W_enc.astype(jnp.bfloat16).astype(jnp.float32)
    h_ref = jnp.tanh(x_bf @ we_bf + b_enc)
    tot, cnt = jnp.float32(0.0), 0
    for i in range(B):
        tn = int(turn_nums[i])
        sent = h_ref[i][cls_idx[i, :tn]]            # all_seq_hs[i][doc[i]==101]
        lg = sent @ W_cls + b_cls
        lab = labels_t[i, :tn]
        lse = jax.scipy.special.logsumexp(lg, axis=-1)
        picked = lg[jnp.arange(tn), lab]
        tot = tot + jnp.sum(lse - picked)
        cnt += tn
    ref = tot / cnt

    np.testing.assert_allclose(np.asarray(loss), np.asarray(ref),
                               rtol=2e-3, atol=2e-3)
    print("KERNEL_OK")
</pallas_src>

<mosaic_0001>
module attributes {stable_mosaic.version = 11 : i64} {
  func.func @kernel(%arg0: memref<32x128xbf16, #tpu.memory_space<vmem>>, %arg1: memref<128x128xbf16, #tpu.memory_space<vmem>>, %arg2: memref<1x128xf32, #tpu.memory_space<vmem>>, %arg3: memref<2x128xf32, #tpu.memory_space<vmem>>, %arg4: memref<2xf32, #tpu.memory_space<smem>>, %arg5: memref<2x3xi32, #tpu.memory_space<smem>>, %arg6: memref<2x3xi32, #tpu.memory_space<smem>>, %arg7: memref<2xi32, #tpu.memory_space<smem>>, %arg8: memref<1x1xf32, #tpu.memory_space<smem>>) attributes {dimension_semantics = [], scalar_prefetch = 0 : i64, scratch_operands = 0 : i64, tpu.core_type = #tpu.core_type<tc>} {
    %c0 = arith.constant 0 : index
    %c0_0 = arith.constant 0 : index
    %0 = vector.load %arg0[%c0, %c0_0] : memref<32x128xbf16, #tpu.memory_space<vmem>>, vector<32x128xbf16>
    %c0_1 = arith.constant 0 : index
    %c0_2 = arith.constant 0 : index
    %1 = vector.load %arg1[%c0_1, %c0_2] : memref<128x128xbf16, #tpu.memory_space<vmem>>, vector<128x128xbf16>
    %cst = arith.constant dense<0.000000e+00> : vector<32x128xf32>
    %2 = tpu.matmul %0, %1, %cst {dimension_numbers = #tpu.dot_dimension_numbers<[1], [0], [0], [1], [0, 0, 1, 1], [], []>} : vector<32x128xbf16>, vector<128x128xbf16>, vector<32x128xf32> -> vector<32x128xf32>
    %c0_3 = arith.constant 0 : index
    %c0_4 = arith.constant 0 : index
    %3 = vector.load %arg2[%c0_3, %c0_4] : memref<1x128xf32, #tpu.memory_space<vmem>>, vector<1x128xf32>
    %4 = vector.broadcast %3 : vector<1x128xf32> to vector<32x128xf32>
    %5 = arith.addf %2, %4 : vector<32x128xf32>
    %6 = math.tanh %5 : vector<32x128xf32>
    %7 = tpu.iota {dimensions = array<i32: 0>} : vector<6x32xi32>
    %8 = tpu.iota {dimensions = array<i32: 1>} : vector<6x32xi32>
    %9 = tpu.iota {dimensions = array<i32: 0>} : vector<6x1xi32>
    %cst_5 = arith.constant 0.000000e+00 : f32
    %10 = vector.broadcast %cst_5 : f32 to vector<6x32xf32>
    %cst_6 = arith.constant 0.000000e+00 : f32
    %11 = vector.broadcast %cst_6 : f32 to vector<6x1xf32>
    %cst_7 = arith.constant 0.000000e+00 : f32
    %12 = vector.broadcast %cst_7 : f32 to vector<6x1xf32>
    %c0_8 = arith.constant 0 : index
    %13 = memref.load %arg7[%c0_8] : memref<2xi32, #tpu.memory_space<smem>>
    %c0_i32 = arith.constant 0 : i32
    %14 = arith.cmpi sgt, %13, %c0_i32 : i32
    %c0_9 = arith.constant 0 : index
    %c0_10 = arith.constant 0 : index
    %15 = memref.load %arg6[%c0_9, %c0_10] : memref<2x3xi32, #tpu.memory_space<smem>>
    %c-1_i32 = arith.constant -1 : i32
    %16 = arith.select %14, %15, %c-1_i32 : i32
    %c0_i32_11 = arith.constant 0 : i32
    %17 = arith.cmpi sge, %16, %c0_i32_11 : i32
    %c0_12 = arith.constant 0 : index
    %c0_13 = arith.constant 0 : index
    %18 = memref.load %arg5[%c0_12, %c0_13] : memref<2x3xi32, #tpu.memory_space<smem>>
    %c0_i32_14 = arith.constant 0 : i32
    %19 = arith.addi %c0_i32_14, %18 : i32
    %c0_i32_15 = arith.constant 0 : i32
    %20 = vector.broadcast %c0_i32_15 : i32 to vector<6x32xi32>
    %21 = arith.cmpi eq, %7, %20 : vector<6x32xi32>
    %22 = vector.broadcast %19 : i32 to vector<6x32xi32>
    %23 = arith.cmpi eq, %8, %22 : vector<6x32xi32>
    %24 = arith.andi %21, %23 : vector<6x32xi1>
    %25 = vector.broadcast %17 : i1 to vector<6x32xi1>
    %26 = arith.andi %24, %25 : vector<6x32xi1>
    %cst_16 = arith.constant 1.000000e+00 : f32
    %27 = vector.broadcast %cst_16 : f32 to vector<6x32xf32>
    %28 = arith.select %26, %27, %10 : vector<6x32xi1>, vector<6x32xf32>
    %c0_i32_17 = arith.constant 0 : i32
    %29 = vector.broadcast %c0_i32_17 : i32 to vector<6x1xi32>
    %30 = arith.cmpi eq, %9, %29 : vector<6x1xi32>
    %c2_i32 = arith.constant 2 : i32
    %31 = arith.muli %c2_i32, %16 : i32
    %c1_i32 = arith.constant 1 : i32
    %32 = arith.subi %c1_i32, %31 : i32
    %33 = arith.sitofp %32 : i32 to f32
    %34 = vector.broadcast %33 : f32 to vector<6x1xf32>
    %35 = arith.select %30, %34, %11 : vector<6x1xi1>, vector<6x1xf32>
    %c0_i32_18 = arith.constant 0 : i32
    %36 = vector.broadcast %c0_i32_18 : i32 to vector<6x1xi32>
    %37 = arith.cmpi eq, %9, %36 : vector<6x1xi32>
    %38 = vector.broadcast %17 : i1 to vector<6x1xi1>
    %39 = arith.andi %37, %38 : vector<6x1xi1>
    %cst_19 = arith.constant 1.000000e+00 : f32
    %40 = vector.broadcast %cst_19 : f32 to vector<6x1xf32>
    %41 = arith.select %39, %40, %12 : vector<6x1xi1>, vector<6x1xf32>
    %c0_20 = arith.constant 0 : index
    %42 = memref.load %arg7[%c0_20] : memref<2xi32, #tpu.memory_space<smem>>
    %c1_i32_21 = arith.constant 1 : i32
    %43 = arith.cmpi sgt, %42, %c1_i32_21 : i32
    %c0_22 = arith.constant 0 : index
    %c1 = arith.constant 1 : index
    %44 = memref.load %arg6[%c0_22, %c1] : memref<2x3xi32, #tpu.memory_space<smem>>
    %c-1_i32_23 = arith.constant -1 : i32
    %45 = arith.select %43, %44, %c-1_i32_23 : i32
    %c0_i32_24 = arith.constant 0 : i32
    %46 = arith.cmpi sge, %45, %c0_i32_24 : i32
    %c0_25 = arith.constant 0 : index
    %c1_26 = arith.constant 1 : index
    %47 = memref.load %arg5[%c0_25, %c1_26] : memref<2x3xi32, #tpu.memory_space<smem>>
    %c0_i32_27 = arith.constant 0 : i32
    %48 = arith.addi %c0_i32_27, %47 : i32
    %c1_i32_28 = arith.constant 1 : i32
    %49 = vector.broadcast %c1_i32_28 : i32 to vector<6x32xi32>
    %50 = arith.cmpi eq, %7, %49 : vector<6x32xi32>
    %51 = vector.broadcast %48 : i32 to vector<6x32xi32>
    %52 = arith.cmpi eq, %8, %51 : vector<6x32xi32>
    %53 = arith.andi %50, %52 : vector<6x32xi1>
    %54 = vector.broadcast %46 : i1 to vector<6x32xi1>
    %55 = arith.andi %53, %54 : vector<6x32xi1>
    %cst_29 = arith.constant 1.000000e+00 : f32
    %56 = vector.broadcast %cst_29 : f32 to vector<6x32xf32>
    %57 = arith.select %55, %56, %28 : vector<6x32xi1>, vector<6x32xf32>
    %c1_i32_30 = arith.constant 1 : i32
    %58 = vector.broadcast %c1_i32_30 : i32 to vector<6x1xi32>
    %59 = arith.cmpi eq, %9, %58 : vector<6x1xi32>
    %c2_i32_31 = arith.constant 2 : i32
    %60 = arith.muli %c2_i32_31, %45 : i32
    %c1_i32_32 = arith.constant 1 : i32
    %61 = arith.subi %c1_i32_32, %60 : i32
    %62 = arith.sitofp %61 : i32 to f32
    %63 = vector.broadcast %62 : f32 to vector<6x1xf32>
    %64 = arith.select %59, %63, %35 : vector<6x1xi1>, vector<6x1xf32>
    %c1_i32_33 = arith.constant 1 : i32
    %65 = vector.broadcast %c1_i32_33 : i32 to vector<6x1xi32>
    %66 = arith.cmpi eq, %9, %65 : vector<6x1xi32>
    %67 = vector.broadcast %46 : i1 to vector<6x1xi1>
    %68 = arith.andi %66, %67 : vector<6x1xi1>
    %cst_34 = arith.constant 1.000000e+00 : f32
    %69 = vector.broadcast %cst_34 : f32 to vector<6x1xf32>
    %70 = arith.select %68, %69, %41 : vector<6x1xi1>, vector<6x1xf32>
    %c0_35 = arith.constant 0 : index
    %71 = memref.load %arg7[%c0_35] : memref<2xi32, #tpu.memory_space<smem>>
    %c2_i32_36 = arith.constant 2 : i32
    %72 = arith.cmpi sgt, %71, %c2_i32_36 : i32
    %c0_37 = arith.constant 0 : index
    %c2 = arith.constant 2 : index
    %73 = memref.load %arg6[%c0_37, %c2] : memref<2x3xi32, #tpu.memory_space<smem>>
    %c-1_i32_38 = arith.constant -1 : i32
    %74 = arith.select %72, %73, %c-1_i32_38 : i32
    %c0_i32_39 = arith.constant 0 : i32
    %75 = arith.cmpi sge, %74, %c0_i32_39 : i32
    %c0_40 = arith.constant 0 : index
    %c2_41 = arith.constant 2 : index
    %76 = memref.load %arg5[%c0_40, %c2_41] : memref<2x3xi32, #tpu.memory_space<smem>>
    %c0_i32_42 = arith.constant 0 : i32
    %77 = arith.addi %c0_i32_42, %76 : i32
    %c2_i32_43 = arith.constant 2 : i32
    %78 = vector.broadcast %c2_i32_43 : i32 to vector<6x32xi32>
    %79 = arith.cmpi eq, %7, %78 : vector<6x32xi32>
    %80 = vector.broadcast %77 : i32 to vector<6x32xi32>
    %81 = arith.cmpi eq, %8, %80 : vector<6x32xi32>
    %82 = arith.andi %79, %81 : vector<6x32xi1>
    %83 = vector.broadcast %75 : i1 to vector<6x32xi1>
    %84 = arith.andi %82, %83 : vector<6x32xi1>
    %cst_44 = arith.constant 1.000000e+00 : f32
    %85 = vector.broadcast %cst_44 : f32 to vector<6x32xf32>
    %86 = arith.select %84, %85, %57 : vector<6x32xi1>, vector<6x32xf32>
    %c2_i32_45 = arith.constant 2 : i32
    %87 = vector.broadcast %c2_i32_45 : i32 to vector<6x1xi32>
    %88 = arith.cmpi eq, %9, %87 : vector<6x1xi32>
    %c2_i32_46 = arith.constant 2 : i32
    %89 = arith.muli %c2_i32_46, %74 : i32
    %c1_i32_47 = arith.constant 1 : i32
    %90 = arith.subi %c1_i32_47, %89 : i32
    %91 = arith.sitofp %90 : i32 to f32
    %92 = vector.broadcast %91 : f32 to vector<6x1xf32>
    %93 = arith.select %88, %92, %64 : vector<6x1xi1>, vector<6x1xf32>
    %c2_i32_48 = arith.constant 2 : i32
    %94 = vector.broadcast %c2_i32_48 : i32 to vector<6x1xi32>
    %95 = arith.cmpi eq, %9, %94 : vector<6x1xi32>
    %96 = vector.broadcast %75 : i1 to vector<6x1xi1>
    %97 = arith.andi %95, %96 : vector<6x1xi1>
    %cst_49 = arith.constant 1.000000e+00 : f32
    %98 = vector.broadcast %cst_49 : f32 to vector<6x1xf32>
    %99 = arith.select %97, %98, %70 : vector<6x1xi1>, vector<6x1xf32>
    %c1_50 = arith.constant 1 : index
    %100 = memref.load %arg7[%c1_50] : memref<2xi32, #tpu.memory_space<smem>>
    %c0_i32_51 = arith.constant 0 : i32
    %101 = arith.cmpi sgt, %100, %c0_i32_51 : i32
    %c1_52 = arith.constant 1 : index
    %c0_53 = arith.constant 0 : index
    %102 = memref.load %arg6[%c1_52, %c0_53] : memref<2x3xi32, #tpu.memory_space<smem>>
    %c-1_i32_54 = arith.constant -1 : i32
    %103 = arith.select %101, %102, %c-1_i32_54 : i32
    %c0_i32_55 = arith.constant 0 : i32
    %104 = arith.cmpi sge, %103, %c0_i32_55 : i32
    %c1_56 = arith.constant 1 : index
    %c0_57 = arith.constant 0 : index
    %105 = memref.load %arg5[%c1_56, %c0_57] : memref<2x3xi32, #tpu.memory_space<smem>>
    %c16_i32 = arith.constant 16 : i32
    %106 = arith.addi %c16_i32, %105 : i32
    %c3_i32 = arith.constant 3 : i32
    %107 = vector.broadcast %c3_i32 : i32 to vector<6x32xi32>
    %108 = arith.cmpi eq, %7, %107 : vector<6x32xi32>
    %109 = vector.broadcast %106 : i32 to vector<6x32xi32>
    %110 = arith.cmpi eq, %8, %109 : vector<6x32xi32>
    %111 = arith.andi %108, %110 : vector<6x32xi1>
    %112 = vector.broadcast %104 : i1 to vector<6x32xi1>
    %113 = arith.andi %111, %112 : vector<6x32xi1>
    %cst_58 = arith.constant 1.000000e+00 : f32
    %114 = vector.broadcast %cst_58 : f32 to vector<6x32xf32>
    %115 = arith.select %113, %114, %86 : vector<6x32xi1>, vector<6x32xf32>
    %c3_i32_59 = arith.constant 3 : i32
    %116 = vector.broadcast %c3_i32_59 : i32 to vector<6x1xi32>
    %117 = arith.cmpi eq, %9, %116 : vector<6x1xi32>
    %c2_i32_60 = arith.constant 2 : i32
    %118 = arith.muli %c2_i32_60, %103 : i32
    %c1_i32_61 = arith.constant 1 : i32
    %119 = arith.subi %c1_i32_61, %118 : i32
    %120 = arith.sitofp %119 : i32 to f32
    %121 = vector.broadcast %120 : f32 to vector<6x1xf32>
    %122 = arith.select %117, %121, %93 : vector<6x1xi1>, vector<6x1xf32>
    %c3_i32_62 = arith.constant 3 : i32
    %123 = vector.broadcast %c3_i32_62 : i32 to vector<6x1xi32>
    %124 = arith.cmpi eq, %9, %123 : vector<6x1xi32>
    %125 = vector.broadcast %104 : i1 to vector<6x1xi1>
    %126 = arith.andi %124, %125 : vector<6x1xi1>
    %cst_63 = arith.constant 1.000000e+00 : f32
    %127 = vector.broadcast %cst_63 : f32 to vector<6x1xf32>
    %128 = arith.select %126, %127, %99 : vector<6x1xi1>, vector<6x1xf32>
    %c1_64 = arith.constant 1 : index
    %129 = memref.load %arg7[%c1_64] : memref<2xi32, #tpu.memory_space<smem>>
    %c1_i32_65 = arith.constant 1 : i32
    %130 = arith.cmpi sgt, %129, %c1_i32_65 : i32
    %c1_66 = arith.constant 1 : index
    %c1_67 = arith.constant 1 : index
    %131 = memref.load %arg6[%c1_66, %c1_67] : memref<2x3xi32, #tpu.memory_space<smem>>
    %c-1_i32_68 = arith.constant -1 : i32
    %132 = arith.select %130, %131, %c-1_i32_68 : i32
    %c0_i32_69 = arith.constant 0 : i32
    %133 = arith.cmpi sge, %132, %c0_i32_69 : i32
    %c1_70 = arith.constant 1 : index
    %c1_71 = arith.constant 1 : index
    %134 = memref.load %arg5[%c1_70, %c1_71] : memref<2x3xi32, #tpu.memory_space<smem>>
    %c16_i32_72 = arith.constant 16 : i32
    %135 = arith.addi %c16_i32_72, %134 : i32
    %c4_i32 = arith.constant 4 : i32
    %136 = vector.broadcast %c4_i32 : i32 to vector<6x32xi32>
    %137 = arith.cmpi eq, %7, %136 : vector<6x32xi32>
    %138 = vector.broadcast %135 : i32 to vector<6x32xi32>
    %139 = arith.cmpi eq, %8, %138 : vector<6x32xi32>
    %140 = arith.andi %137, %139 : vector<6x32xi1>
    %141 = vector.broadcast %133 : i1 to vector<6x32xi1>
    %142 = arith.andi %140, %141 : vector<6x32xi1>
    %cst_73 = arith.constant 1.000000e+00 : f32
    %143 = vector.broadcast %cst_73 : f32 to vector<6x32xf32>
    %144 = arith.select %142, %143, %115 : vector<6x32xi1>, vector<6x32xf32>
    %c4_i32_74 = arith.constant 4 : i32
    %145 = vector.broadcast %c4_i32_74 : i32 to vector<6x1xi32>
    %146 = arith.cmpi eq, %9, %145 : vector<6x1xi32>
    %c2_i32_75 = arith.constant 2 : i32
    %147 = arith.muli %c2_i32_75, %132 : i32
    %c1_i32_76 = arith.constant 1 : i32
    %148 = arith.subi %c1_i32_76, %147 : i32
    %149 = arith.sitofp %148 : i32 to f32
    %150 = vector.broadcast %149 : f32 to vector<6x1xf32>
    %151 = arith.select %146, %150, %122 : vector<6x1xi1>, vector<6x1xf32>
    %c4_i32_77 = arith.constant 4 : i32
    %152 = vector.broadcast %c4_i32_77 : i32 to vector<6x1xi32>
    %153 = arith.cmpi eq, %9, %152 : vector<6x1xi32>
    %154 = vector.broadcast %133 : i1 to vector<6x1xi1>
    %155 = arith.andi %153, %154 : vector<6x1xi1>
    %cst_78 = arith.constant 1.000000e+00 : f32
    %156 = vector.broadcast %cst_78 : f32 to vector<6x1xf32>
    %157 = arith.select %155, %156, %128 : vector<6x1xi1>, vector<6x1xf32>
    %c1_79 = arith.constant 1 : index
    %158 = memref.load %arg7[%c1_79] : memref<2xi32, #tpu.memory_space<smem>>
    %c2_i32_80 = arith.constant 2 : i32
    %159 = arith.cmpi sgt, %158, %c2_i32_80 : i32
    %c1_81 = arith.constant 1 : index
    %c2_82 = arith.constant 2 : index
    %160 = memref.load %arg6[%c1_81, %c2_82] : memref<2x3xi32, #tpu.memory_space<smem>>
    %c-1_i32_83 = arith.constant -1 : i32
    %161 = arith.select %159, %160, %c-1_i32_83 : i32
    %c0_i32_84 = arith.constant 0 : i32
    %162 = arith.cmpi sge, %161, %c0_i32_84 : i32
    %c1_85 = arith.constant 1 : index
    %c2_86 = arith.constant 2 : index
    %163 = memref.load %arg5[%c1_85, %c2_86] : memref<2x3xi32, #tpu.memory_space<smem>>
    %c16_i32_87 = arith.constant 16 : i32
    %164 = arith.addi %c16_i32_87, %163 : i32
    %c5_i32 = arith.constant 5 : i32
    %165 = vector.broadcast %c5_i32 : i32 to vector<6x32xi32>
    %166 = arith.cmpi eq, %7, %165 : vector<6x32xi32>
    %167 = vector.broadcast %164 : i32 to vector<6x32xi32>
    %168 = arith.cmpi eq, %8, %167 : vector<6x32xi32>
    %169 = arith.andi %166, %168 : vector<6x32xi1>
    %170 = vector.broadcast %162 : i1 to vector<6x32xi1>
    %171 = arith.andi %169, %170 : vector<6x32xi1>
    %cst_88 = arith.constant 1.000000e+00 : f32
    %172 = vector.broadcast %cst_88 : f32 to vector<6x32xf32>
    %173 = arith.select %171, %172, %144 : vector<6x32xi1>, vector<6x32xf32>
    %c5_i32_89 = arith.constant 5 : i32
    %174 = vector.broadcast %c5_i32_89 : i32 to vector<6x1xi32>
    %175 = arith.cmpi eq, %9, %174 : vector<6x1xi32>
    %c2_i32_90 = arith.constant 2 : i32
    %176 = arith.muli %c2_i32_90, %161 : i32
    %c1_i32_91 = arith.constant 1 : i32
    %177 = arith.subi %c1_i32_91, %176 : i32
    %178 = arith.sitofp %177 : i32 to f32
    %179 = vector.broadcast %178 : f32 to vector<6x1xf32>
    %180 = arith.select %175, %179, %151 : vector<6x1xi1>, vector<6x1xf32>
    %c5_i32_92 = arith.constant 5 : i32
    %181 = vector.broadcast %c5_i32_92 : i32 to vector<6x1xi32>
    %182 = arith.cmpi eq, %9, %181 : vector<6x1xi32>
    %183 = vector.broadcast %162 : i1 to vector<6x1xi1>
    %184 = arith.andi %182, %183 : vector<6x1xi1>
    %cst_93 = arith.constant 1.000000e+00 : f32
    %185 = vector.broadcast %cst_93 : f32 to vector<6x1xf32>
    %186 = arith.select %184, %185, %157 : vector<6x1xi1>, vector<6x1xf32>
    %cst_94 = arith.constant dense<0.000000e+00> : vector<6x128xf32>
    %187 = tpu.matmul %173, %6, %cst_94 {dimension_numbers = #tpu.dot_dimension_numbers<[1], [0], [0], [1], [0, 0, 1, 1], [], []>} : vector<6x32xf32>, vector<32x128xf32>, vector<6x128xf32> -> vector<6x128xf32>
    %c1_95 = arith.constant 1 : index
    %c0_96 = arith.constant 0 : index
    %188 = vector.load %arg3[%c1_95, %c0_96] : memref<2x128xf32, #tpu.memory_space<vmem>>, vector<1x128xf32>
    %c0_97 = arith.constant 0 : index
    %c0_98 = arith.constant 0 : index
    %189 = vector.load %arg3[%c0_97, %c0_98] : memref<2x128xf32, #tpu.memory_space<vmem>>, vector<1x128xf32>
    %190 = arith.subf %188, %189 : vector<1x128xf32>
    %c1_99 = arith.constant 1 : index
    %191 = memref.load %arg4[%c1_99] : memref<2xf32, #tpu.memory_space<smem>>
    %c0_100 = arith.constant 0 : index
    %192 = memref.load %arg4[%c0_100] : memref<2xf32, #tpu.memory_space<smem>>
    %193 = arith.subf %191, %192 : f32
    %194 = vector.broadcast %190 : vector<1x128xf32> to vector<6x128xf32>
    %195 = arith.mulf %187, %194 : vector<6x128xf32>
    %cst_101 = arith.constant dense<0.000000e+00> : vector<6xf32>
    %196 = vector.multi_reduction <add>, %195, %cst_101 [1] : vector<6x128xf32> to vector<6xf32>
    %197 = vector.shape_cast %196 : vector<6xf32> to vector<6x1xf32>
    %198 = vector.broadcast %193 : f32 to vector<6x1xf32>
    %199 = arith.addf %197, %198 : vector<6x1xf32>
    %200 = arith.mulf %180, %199 : vector<6x1xf32>
    %cst_102 = arith.constant 0.000000e+00 : f32
    %201 = vector.broadcast %cst_102 : f32 to vector<6x1xf32>
    %202 = arith.maximumf %200, %201 : vector<6x1xf32>
    %203 = math.absf %200 : vector<6x1xf32>
    %cst_103 = arith.constant 0.000000e+00 : f32
    %204 = vector.broadcast %cst_103 : f32 to vector<6x1xf32>
    %205 = arith.subf %204, %203 : vector<6x1xf32>
    %206 = math.exp %205 : vector<6x1xf32>
    %cst_104 = arith.constant 1.000000e+00 : f32
    %207 = vector.broadcast %cst_104 : f32 to vector<6x1xf32>
    %208 = arith.addf %207, %206 : vector<6x1xf32>
    %209 = math.log %208 : vector<6x1xf32>
    %210 = arith.addf %202, %209 : vector<6x1xf32>
    %211 = arith.mulf %210, %186 : vector<6x1xf32>
    %212 = vector.shape_cast %211 : vector<6x1xf32> to vector<1x6x1xf32>
    %cst_105 = arith.constant dense<0.000000e+00> : vector<1xf32>
    %213 = vector.multi_reduction <add>, %212, %cst_105 [1, 2] : vector<1x6x1xf32> to vector<1xf32>
    %214 = vector.shape_cast %213 : vector<1xf32> to vector<1x1x1xf32>
    %215 = vector.extract %214[0, 0, 0] : f32 from vector<1x1x1xf32>
    %216 = vector.shape_cast %186 : vector<6x1xf32> to vector<1x6x1xf32>
    %cst_106 = arith.constant dense<0.000000e+00> : vector<1xf32>
    %217 = vector.multi_reduction <add>, %216, %cst_106 [1, 2] : vector<1x6x1xf32> to vector<1xf32>
    %218 = vector.shape_cast %217 : vector<1xf32> to vector<1x1x1xf32>
    %219 = vector.extract %218[0, 0, 0] : f32 from vector<1x1x1xf32>
    %220 = arith.divf %215, %219 : f32
    %c0_107 = arith.constant 0 : index
    %c0_108 = arith.constant 0 : index
    %221 = memref.load %arg8[%c0_107, %c0_108] : memref<1x1xf32, #tpu.memory_space<smem>>
    memref.store %220, %arg8[%c0_107, %c0_108] : memref<1x1xf32, #tpu.memory_space<smem>>
    return
  }
}

</mosaic_0001>

<llo_original>
// kernel: tpu_custom_call.1
$region0: #{tpu_custom_call.1}
  #allocation0 [shape = 'u32[]', space=smem, size = 0x4, offset = 0x4, fixed_abs, tag = 'smem constant byte address 0x4 - core index']
  #allocation1 [shape = 'u32[144,128]{1,0:T(1,128)}', space=vmem, size = 0x12000, scoped, tag = 'internal scratch']
  %s0 = inlined_call_operand.hbm [shape: bf16[32,128], index: 0, kind: input, shape index: {}]
  %s1 = inlined_call_operand.hbm [shape: bf16[128,128], index: 1, kind: input, shape index: {}]
  %s2 = inlined_call_operand.vmem [shape: f32[1,128], index: 2, kind: input, shape index: {}]
  %s3 = inlined_call_operand.vmem [shape: f32[2,128], index: 3, kind: input, shape index: {}]
  %s4 = inlined_call_operand.hbm [shape: f32[2], index: 4, kind: input, shape index: {}]
  %s5 = inlined_call_operand.vmem [shape: s32[2,3], index: 5, kind: input, shape index: {}]
  %s6 = inlined_call_operand.vmem [shape: s32[2,3], index: 6, kind: input, shape index: {}]
  %s7 = inlined_call_operand.vmem [shape: s32[2], index: 7, kind: input, shape index: {}]
  %s8 = inlined_call_operand.hbm [shape: f32[1,1], index: 8, kind: output, shape index: {}]
  %s9 = sld [smem:[#allocation0]]
  $region66: #{tpu_custom_call.1} parent=0
    _
  %s11 = ssub.s32 1, %s9
  %s12 = scalar_select 0, %s11, %s9
  $region1: #{tpu_custom_call.1} parent=0
    #allocation2 [shape = 'u8[8192]{0}', space=vmem, size = 0x2000, scoped, tag = 'input window, operand 0, single buffered']
    #allocation3 [shape = 's32[1]{0}', space=sflag, size = 0x4, scoped, tag = 'scoped memory for tpu_custom_call.1']
    #allocation4 [shape = 's32[1]{0}', space=sflag, size = 0x4, scoped, tag = 'scoped memory for tpu_custom_call.1']
    #allocation5 [shape = 's32[1]{0}', space=sflag, size = 0x4, scoped, tag = 'scoped memory for tpu_custom_call.1']
    #allocation6 [shape = 's32[1]{0}', space=sflag, size = 0x4, scoped, tag = 'scoped memory for tpu_custom_call.1']
    #allocation7 [shape = 'u8[32768]{0}', space=vmem, size = 0x8000, scoped, tag = 'input window, operand 1, single buffered']
    #allocation8 [shape = 's32[1]{0}', space=sflag, size = 0x4, scoped, tag = 'scoped memory for tpu_custom_call.1']
    #allocation9 [shape = 'u8[512]{0}', space=smem, size = 0x200, scoped, tag = 'input window, operand 4, single buffered']
    #allocation10 [shape = 'u8[1024]{0}', space=smem, size = 0x400, scoped, tag = 'input window, operand 5, single buffered']
    #allocation11 [shape = 'u8[1024]{0}', space=smem, size = 0x400, scoped, tag = 'input window, operand 6, single buffered']
    #allocation12 [shape = 's32[1]{0}', space=sflag, size = 0x4, scoped, tag = 'scoped memory for tpu_custom_call.1']
    #allocation13 [shape = 'u8[512]{0}', space=smem, size = 0x200, scoped, tag = 'input window, operand 7, single buffered']
    #allocation14 [shape = 'u8[512]{0}', space=smem, size = 0x200, scoped, tag = 'output window, operand 0, single buffered']
    %13 = vsyncpa [#allocation3], 0
    %14 = vsyncpa [#allocation8], 0
    %15 = vsyncpa [#allocation4], 0
    %16 = vsyncpa [#allocation6], 0
    %17 = vsyncpa [#allocation12], 0
    %18 = vsyncpa [#allocation5], 0
    // Predicated region
    $region2: #{tpu_custom_call.1} parent=1 // pred_check
      _
    $region3: #{tpu_custom_call.1} parent=1 // pred_check_branch
      %20 = sbr.rel (0) target = $region5
    $region4: #{tpu_custom_call.1} parent=1 // pred_region
      %s22 = ssub.s32 256, 256
      %23 = vsyncadd [#allocation3], %s22
      %s24 = sshll.u32 [#allocation2], 4
      %s25 = int_to_ptr.vmem [resolvable:$true] %s24
      %30 = dma.hbm_to_vmem [thread:$0]  %s0, 256, %s25, [#allocation3], 64, 64, 4
    $region5: #{tpu_custom_call.1} parent=1 // pred_fallthru
      _
    // Predicated region
    $region6: #{tpu_custom_call.1} parent=1 // pred_check
      _
    $region7: #{tpu_custom_call.1} parent=1 // pred_check_branch
      %32 = sbr.rel (0) target = $region9
    $region8: #{tpu_custom_call.1} parent=1 // pred_region
      %s34 = ssub.s32 1024, 1024
      %35 = vsyncadd [#allocation8], %s34
      %s36 = sshll.u32 [#allocation7], 4
      %s37 = int_to_ptr.vmem [resolvable:$true] %s36
      %42 = dma.hbm_to_vmem [thread:$0]  %s1, 1024, %s37, [#allocation8], 64, 64, 4
    $region9: #{tpu_custom_call.1} parent=1 // pred_fallthru
      _
    // Predicated region
    $region10: #{tpu_custom_call.1} parent=1 // pred_check
      _
    $region11: #{tpu_custom_call.1} parent=1 // pred_check_branch
      %44 = sbr.rel (0) target = $region13
    $region12: #{tpu_custom_call.1} parent=1 // pred_region
      _
    $region13: #{tpu_custom_call.1} parent=1 // pred_fallthru
      _
    // Predicated region
    $region14: #{tpu_custom_call.1} parent=1 // pred_check
      _
    $region15: #{tpu_custom_call.1} parent=1 // pred_check_branch
      %46 = sbr.rel (0) target = $region17
    $region16: #{tpu_custom_call.1} parent=1 // pred_region
      _
    $region17: #{tpu_custom_call.1} parent=1 // pred_fallthru
      _
    // Predicated region
    $region18: #{tpu_custom_call.1} parent=1 // pred_check
      _
    $region19: #{tpu_custom_call.1} parent=1 // pred_check_branch
      %48 = sbr.rel (0) target = $region21
    $region20: #{tpu_custom_call.1} parent=1 // pred_region
      %s50 = ssub.s32 16, 16
      %51 = vsyncadd [#allocation4], %s50
      %54 = dma.hbm_to_smem %s4, 16, [#allocation9], [#allocation4]
    $region21: #{tpu_custom_call.1} parent=1 // pred_fallthru
      _
    // Predicated region
    $region22: #{tpu_custom_call.1} parent=1 // pred_check
      _
    $region23: #{tpu_custom_call.1} parent=1 // pred_check_branch
      %56 = sbr.rel (0) target = $region25
    $region24: #{tpu_custom_call.1} parent=1 // pred_region
      %s58 = ssub.s32 32, 32
      %59 = vsyncadd [#allocation6], %s58
      %s61 = sshll.u32 %s5, 4
      %s62 = int_to_ptr.vmem [resolvable:$true] %s61
      %64 = dma.vmem_to_smem %s62, 32, [#allocation10], [#allocation6]
    $region25: #{tpu_custom_call.1} parent=1 // pred_fallthru
      _
    // Predicated region
    $region26: #{tpu_custom_call.1} parent=1 // pred_check
      _
    $region27: #{tpu_custom_call.1} parent=1 // pred_check_branch
      %66 = sbr.rel (0) target = $region29
    $region28: #{tpu_custom_call.1} parent=1 // pred_region
      %s68 = ssub.s32 32, 32
      %69 = vsyncadd [#allocation12], %s68
      %s71 = sshll.u32 %s6, 4
      %s72 = int_to_ptr.vmem [resolvable:$true] %s71
      %74 = dma.vmem_to_smem %s72, 32, [#allocation11], [#allocation12]
    $region29: #{tpu_custom_call.1} parent=1 // pred_fallthru
      _
    // Predicated region
    $region30: #{tpu_custom_call.1} parent=1 // pred_check
      _
    $region31: #{tpu_custom_call.1} parent=1 // pred_check_branch
      %76 = sbr.rel (0) target = $region33
    $region32: #{tpu_custom_call.1} parent=1 // pred_region
      %s78 = ssub.s32 16, 16
      %79 = vsyncadd [#allocation12], %s78
      %s81 = sshll.u32 %s7, 4
      %s82 = int_to_ptr.vmem [resolvable:$true] %s81
      %84 = dma.vmem_to_smem %s82, 16, [#allocation13], [#allocation12]
    $region33: #{tpu_custom_call.1} parent=1 // pred_fallthru
      _
    // Predicated region
    $region34: #{tpu_custom_call.1} parent=1 // pred_check
      _
    $region35: #{tpu_custom_call.1} parent=1 // pred_check_branch
      %86 = sbr.rel (0) target = $region37
    $region36: #{tpu_custom_call.1} parent=1 // pred_region
      %87 = dma.done [#allocation3], 256
    $region37: #{tpu_custom_call.1} parent=1 // pred_fallthru
      _
    // Predicated region
    $region38: #{tpu_custom_call.1} parent=1 // pred_check
      _
    $region39: #{tpu_custom_call.1} parent=1 // pred_check_branch
      %89 = sbr.rel (0) target = $region41
    $region40: #{tpu_custom_call.1} parent=1 // pred_region
      %90 = dma.done [#allocation8], 1024
    $region41: #{tpu_custom_call.1} parent=1 // pred_fallthru
      _
    // Predicated region
    $region42: #{tpu_custom_call.1} parent=1 // pred_check
      _
    $region43: #{tpu_custom_call.1} parent=1 // pred_check_branch
      %92 = sbr.rel (0) target = $region45
    $region44: #{tpu_custom_call.1} parent=1 // pred_region
      %93 = dma.done [#allocation4], 16
    $region45: #{tpu_custom_call.1} parent=1 // pred_fallthru
      _
    // Predicated region
    $region46: #{tpu_custom_call.1} parent=1 // pred_check
      _
    $region47: #{tpu_custom_call.1} parent=1 // pred_check_branch
      %95 = sbr.rel (0) target = $region49
    $region48: #{tpu_custom_call.1} parent=1 // pred_region
      %96 = dma.done [#allocation6], 32
    $region49: #{tpu_custom_call.1} parent=1 // pred_fallthru
      _
    // Predicated region
    $region50: #{tpu_custom_call.1} parent=1 // pred_check
      _
    $region51: #{tpu_custom_call.1} parent=1 // pred_check_branch
      %98 = sbr.rel (0) target = $region53
    $region52: #{tpu_custom_call.1} parent=1 // pred_region
      %99 = dma.done [#allocation12], 32
    $region53: #{tpu_custom_call.1} parent=1 // pred_fallthru
      _
    // Predicated region
    $region54: #{tpu_custom_call.1} parent=1 // pred_check
      _
    $region55: #{tpu_custom_call.1} parent=1 // pred_check_branch
      %101 = sbr.rel (0) target = $region57
    $region56: #{tpu_custom_call.1} parent=1 // pred_region
      %102 = dma.done [#allocation12], 16
    $region57: #{tpu_custom_call.1} parent=1 // pred_fallthru
      _
    %103 = sfence
    %v105 = vld [vmem:[#allocation2] sm:$0xf]
    %v106 = vld [vmem:[#allocation2 + $0x4] sm:$0xf]
    %v107 = vld [vmem:[#allocation2 + $0x8] sm:$0xf]
    %v108 = vld [vmem:[#allocation2 + $0xc] sm:$0xf]
    %v109 = vld [vmem:[#allocation7] sm:$0xf]
    %v110 = vld [vmem:[#allocation7 + $0x4] sm:$0xf]
    %v111 = vld [vmem:[#allocation7 + $0x8] sm:$0xf]
    %v112 = vld [vmem:[#allocation7 + $0xc] sm:$0xf]
    %v113 = vld [vmem:[#allocation7 + $0x10] sm:$0xf]
    %v114 = vld [vmem:[#allocation7 + $0x14] sm:$0xf]
    %v115 = vld [vmem:[#allocation7 + $0x18] sm:$0xf]
    %v116 = vld [vmem:[#allocation7 + $0x1c] sm:$0xf]
    %v117 = vld [vmem:[#allocation7 + $0x20] sm:$0xf]
    %v118 = vld [vmem:[#allocation7 + $0x24] sm:$0xf]
    %v119 = vld [vmem:[#allocation7 + $0x28] sm:$0xf]
    %v120 = vld [vmem:[#allocation7 + $0x2c] sm:$0xf]
    %v121 = vld [vmem:[#allocation7 + $0x30] sm:$0xf]
    %v122 = vld [vmem:[#allocation7 + $0x34] sm:$0xf]
    %v123 = vld [vmem:[#allocation7 + $0x38] sm:$0xf]
    %v124 = vld [vmem:[#allocation7 + $0x3c] sm:$0xf]
    %v125 = vld [vmem:[%s2] sm:$0x1]
    %v127 = vlaneseq
    %v128 = vshrl.u32 %v127, 7
    %v129 = vsub.s32 0, %v128
    %v130 = vrot.slane %v125, %v129
    %v136 = vunpack.c.l.b16 %v105
    %v137 = vunpack.c.l.b16 %v106
    %v138 = vunpack.c.l.b16 %v107
    %v139 = vunpack.c.l.b16 %v108
    %v140 = vpack.c.b16 %v137, %v136
    %v141 = vpack.c.b16 %v139, %v138
    %v160 = vunpack.c.l.b16 %v109
    %v161 = vunpack.c.l.b16 %v110
    %v162 = vunpack.c.l.b16 %v111
    %v163 = vunpack.c.l.b16 %v112
    %v164 = vunpack.c.l.b16 %v113
    %v165 = vunpack.c.l.b16 %v114
    %v166 = vunpack.c.l.b16 %v115
    %v167 = vunpack.c.l.b16 %v116
    %v168 = vunpack.c.l.b16 %v117
    %v169 = vunpack.c.l.b16 %v118
    %v170 = vunpack.c.l.b16 %v119
    %v171 = vunpack.c.l.b16 %v120
    %v172 = vunpack.c.l.b16 %v121
    %v173 = vunpack.c.l.b16 %v122
    %v174 = vunpack.c.l.b16 %v123
    %v175 = vunpack.c.l.b16 %v124
    %v176 = vpack.c.b16 %v161, %v160
    %v177 = vpack.c.b16 %v163, %v162
    %v178 = vpack.c.b16 %v165, %v164
    %v179 = vpack.c.b16 %v167, %v166
    %v180 = vpack.c.b16 %v169, %v168
    %v181 = vpack.c.b16 %v171, %v170
    %v182 = vpack.c.b16 %v173, %v172
    %v183 = vpack.c.b16 %v175, %v174
    %192 = vmatprep.subr.bf16.mxu0 0
    %193 = vmatpush1.bf16.msra.mxu0 %v183
    %194 = vmatprep.subr.bf16.mxu0 0
    %195 = vmatpush1.bf16.msra.mxu0 %v182
    %196 = vmatprep.subr.bf16.mxu0 0
    %197 = vmatpush1.bf16.msra.mxu0 %v181
    %198 = vmatprep.subr.bf16.mxu0 0
    %199 = vmatpush1.bf16.msra.mxu0 %v180
    %200 = vmatprep.subr.bf16.mxu0 0
    %201 = vmatpush1.bf16.msra.mxu0 %v179
    %202 = vmatprep.subr.bf16.mxu0 0
    %203 = vmatpush1.bf16.msra.mxu0 %v178
    %204 = vmatprep.subr.bf16.mxu0 0
    %205 = vmatpush1.bf16.msra.mxu0 %v177
    %206 = vmatprep.subr.bf16.mxu0 0
    %207 = vmatpush1.bf16.msra.mxu0 %v176
    %208 = vmatprep.subr.bf16.mxu0 0
    %209 = vmatpush2.bf16.msra.mxu0 0
    %210 = vmatprep.subr.bf16.mxu0 0
    %211 = vmatpush2.bf16.msra.mxu0 0
    %212 = vmatprep.subr.bf16.mxu0 0
    %213 = vmatpush2.bf16.msra.mxu0 0
    %214 = vmatprep.subr.bf16.mxu0 0
    %215 = vmatpush2.bf16.msra.mxu0 0
    %216 = vmatprep.subr.bf16.mxu0 0
    %217 = vmatpush2.bf16.msra.mxu0 0
    %218 = vmatprep.subr.bf16.mxu0 0
    %219 = vmatpush2.bf16.msra.mxu0 0
    %220 = vmatprep.subr.bf16.mxu0 0
    %221 = vmatpush2.bf16.msra.mxu0 0
    %222 = vmatprep.subr.bf16.mxu0 0
    %223 = vmatpush2.bf16.msra.mxu0 0
    %224 = vmatprep.mubr.bf16.mxu0 0
    %225 = vmatmul.mubr.bf16.gmra.mxu0 %v140
    %v226 = vpop.f32.mrf.mxu0
    %v227 = vadd.f32 %v130, %v226
    %v228 = vpop.f32.mrf.mxu0
    %v229 = vpop.f32.mrf.mxu0
    %v230 = vadd.f32 %v130, %v229
    %v231 = vpop.f32.mrf.mxu0
    %232 = vmatprep.mubr.bf16.mxu0 0
    %233 = vmatmul.mubr.bf16.gmra.mxu0 %v141
    %v234 = vpop.f32.mrf.mxu0
    %v235 = vadd.f32 %v130, %v234
    %v236 = vpop.f32.mrf.mxu0
    %v237 = vpop.f32.mrf.mxu0
    %v238 = vadd.f32 %v130, %v237
    %v239 = vpop.f32.mrf.mxu0
    %240 = vdwg.mxu0
    %v241 = vtanh.pop %v227
    %v242 = vtanh.pop %v230
    %v243 = vtanh.pop %v235
    %v244 = vtanh.pop %v238
    %v245 = vlaneseq
    %v246 = vshrl.u32 %v245, 7
    %v247 = vlaneseq
    %v248 = vand.u32 %v247, 127
    %s249 = sld [smem:[#allocation13]]
    %p250 = scmp.gt.s32.totalorder %s249, 0
    %s251 = sld [smem:[#allocation11]]
    %s252 = scalar_select %p250, %s251, 4294967295
    %p253 = scmp.ge.s32.totalorder %s252, 0
    %s254 = sld [smem:[#allocation10]]
    %vm255 = vcmp.eq.s32.totalorder %v246, 0
    %v256 = vstv %s254
    %vm257 = vcmp.eq.s32.totalorder %v248, %v256
    %vm258 = vmand %vm255, %vm257
    %s259 = scalar_select %p253, 1, 0
    %v260 = vstv %s259
    %vm261 = vcmp.eq.s32.totalorder %v260, 1
    %vm262 = vmand %vm258, %vm261
    %v263 = vsel %vm262, 1.0, 0.0
    %s264 = smul.u32 %s252, 2
    %s265 = ssub.s32 1, %s264
    %s266 = scvt.s32.f32 %s265
    %v267 = vstv %s266
    %v268 = vsel %vm255, %v267, 0.0
    %vm269 = vmand %vm255, %vm261
    %v270 = vsel %vm269, 1.0, 0.0
    %p271 = scmp.gt.s32.totalorder %s249, 1
    %s272 = sld [smem:[#allocation11 + $0x1]]
    %s273 = scalar_select %p271, %s272, 4294967295
    %p274 = scmp.ge.s32.totalorder %s273, 0
    %s275 = sld [smem:[#allocation10 + $0x1]]
    %vm276 = vcmp.eq.s32.totalorder %v246, 1
    %v277 = vstv %s275
    %vm278 = vcmp.eq.s32.totalorder %v248, %v277
    %vm279 = vmand %vm276, %vm278
    %s280 = scalar_select %p274, 1, 0
    %v281 = vstv %s280
    %vm282 = vcmp.eq.s32.totalorder %v281, 1
    %vm283 = vmand %vm279, %vm282
    %v284 = vsel %vm283, 1.0, %v263
    %s285 = smul.u32 %s273, 2
    %s286 = ssub.s32 1, %s285
    %s287 = scvt.s32.f32 %s286
    %v288 = vstv %s287
    %v289 = vsel %vm276, %v288, %v268
    %vm290 = vmand %vm276, %vm282
    %v291 = vsel %vm290, 1.0, %v270
    %p292 = scmp.gt.s32.totalorder %s249, 2
    %s293 = sld [smem:[#allocation11 + $0x2]]
    %s294 = scalar_select %p292, %s293, 4294967295
    %p295 = scmp.ge.s32.totalorder %s294, 0
    %s296 = sld [smem:[#allocation10 + $0x2]]
    %vm297 = vcmp.eq.s32.totalorder %v246, 2
    %v298 = vstv %s296
    %vm299 = vcmp.eq.s32.totalorder %v248, %v298
    %vm300 = vmand %vm297, %vm299
    %s301 = scalar_select %p295, 1, 0
    %v302 = vstv %s301
    %vm303 = vcmp.eq.s32.totalorder %v302, 1
    %vm304 = vmand %vm300, %vm303
    %v305 = vsel %vm304, 1.0, %v284
    %s306 = smul.u32 %s294, 2
    %s307 = ssub.s32 1, %s306
    %s308 = scvt.s32.f32 %s307
    %v309 = vstv %s308
    %v310 = vsel %vm297, %v309, %v289
    %vm311 = vmand %vm297, %vm303
    %v312 = vsel %vm311, 1.0, %v291
    %s313 = sld [smem:[#allocation13 + $0x1]]
    %p314 = scmp.gt.s32.totalorder %s313, 0
    %s315 = sld [smem:[#allocation11 + $0x80]]
    %s316 = scalar_select %p314, %s315, 4294967295
    %p317 = scmp.ge.s32.totalorder %s316, 0
    %s318 = sld [smem:[#allocation10 + $0x80]]
    %s319 = sadd.s32 %s318, 16
    %vm320 = vcmp.eq.s32.totalorder %v246, 3
    %v321 = vstv %s319
    %vm322 = vcmp.eq.s32.totalorder %v248, %v321
    %vm323 = vmand %vm320, %vm322
    %s324 = scalar_select %p317, 1, 0
    %v325 = vstv %s324
    %vm326 = vcmp.eq.s32.totalorder %v325, 1
    %vm327 = vmand %vm323, %vm326
    %v328 = vsel %vm327, 1.0, %v305
    %s329 = smul.u32 %s316, 2
    %s330 = ssub.s32 1, %s329
    %s331 = scvt.s32.f32 %s330
    %v332 = vstv %s331
    %v333 = vsel %vm320, %v332, %v310
    %vm334 = vmand %vm320, %vm326
    %v335 = vsel %vm334, 1.0, %v312
    %p336 = scmp.gt.s32.totalorder %s313, 1
    %s337 = sld [smem:[#allocation11 + $0x81]]
    %s338 = scalar_select %p336, %s337, 4294967295
    %p339 = scmp.ge.s32.totalorder %s338, 0
    %s340 = sld [smem:[#allocation10 + $0x81]]
    %s341 = sadd.s32 %s340, 16
    %vm342 = vcmp.eq.s32.totalorder %v246, 4
    %v343 = vstv %s341
    %vm344 = vcmp.eq.s32.totalorder %v248, %v343
    %vm345 = vmand %vm342, %vm344
    %s346 = scalar_select %p339, 1, 0
    %v347 = vstv %s346
    %vm348 = vcmp.eq.s32.totalorder %v347, 1
    %vm349 = vmand %vm345, %vm348
    %v350 = vsel %vm349, 1.0, %v328
    %s351 = smul.u32 %s338, 2
    %s352 = ssub.s32 1, %s351
    %s353 = scvt.s32.f32 %s352
    %v354 = vstv %s353
    %v355 = vsel %vm342, %v354, %v333
    %vm356 = vmand %vm342, %vm348
    %v357 = vsel %vm356, 1.0, %v335
    %p358 = scmp.gt.s32.totalorder %s313, 2
    %s359 = sld [smem:[#allocation11 + $0x82]]
    %s360 = scalar_select %p358, %s359, 4294967295
    %p361 = scmp.ge.s32.totalorder %s360, 0
    %s362 = sld [smem:[#allocation10 + $0x82]]
    %s363 = sadd.s32 %s362, 16
    %vm364 = vcmp.eq.s32.totalorder %v246, 5
    %v365 = vstv %s363
    %vm366 = vcmp.eq.s32.totalorder %v248, %v365
    %vm367 = vmand %vm364, %vm366
    %s368 = scalar_select %p361, 1, 0
    %v369 = vstv %s368
    %vm370 = vcmp.eq.s32.totalorder %v369, 1
    %vm371 = vmand %vm367, %vm370
    %v372 = vsel %vm371, 1.0, %v350
    %s373 = smul.u32 %s360, 2
    %s374 = ssub.s32 1, %s373
    %s375 = scvt.s32.f32 %s374
    %v376 = vstv %s375
    %v377 = vsel %vm364, %v376, %v355
    %vm378 = vmand %vm364, %vm370
    %v379 = vsel %vm378, 1.0, %v357
    %vm380 = vcmask 261120
    %v382 = vsel %vm380, %v372, 0
    %384 = vmatprep.subr.mxu0 0.0
    %385 = vmatpush1.msra.mxu0 0.0
    %386 = vmatprep.subr.mxu0 0.0
    %387 = vmatpush1.msra.mxu0 0.0
    %388 = vmatprep.subr.mxu0 0.0
    %389 = vmatpush1.msra.mxu0 0.0
    %390 = vmatprep.subr.mxu0 0.0
    %391 = vmatpush1.msra.mxu0 0.0
    %392 = vmatprep.subr.mxu0 0.0
    %393 = vmatpush1.msra.mxu0 0.0
    %394 = vmatprep.subr.mxu0 0.0
    %395 = vmatpush1.msra.mxu0 0.0
    %396 = vmatprep.subr.mxu0 0.0
    %397 = vmatpush1.msra.mxu0 0.0
    %398 = vmatprep.subr.mxu0 0.0
    %399 = vmatpush1.msra.mxu0 0.0
    %400 = vmatprep.subr.mxu0 0.0
    %401 = vmatpush1.msra.mxu0 0.0
    %402 = vmatprep.subr.mxu0 0.0
    %403 = vmatpush1.msra.mxu0 0.0
    %404 = vmatprep.subr.mxu0 0.0
    %405 = vmatpush1.msra.mxu0 0.0
    %406 = vmatprep.subr.mxu0 0.0
    %407 = vmatpush1.msra.mxu0 0.0
    %408 = vmatprep.subr.mxu0 0.0
    %409 = vmatpush1.msra.mxu0 %v244
    %410 = vmatprep.subr.mxu0 0.0
    %411 = vmatpush1.msra.mxu0 %v243
    %412 = vmatprep.subr.mxu0 0.0
    %413 = vmatpush1.msra.mxu0 %v242
    %414 = vmatprep.subr.mxu0 0.0
    %415 = vmatpush1.msra.mxu0 %v241
    %416 = vmatprep.subr.mxu0 0.0
    %417 = vmatpush2.msra.mxu0 0.0
    %418 = vmatprep.subr.mxu0 0.0
    %419 = vmatpush2.msra.mxu0 0.0
    %420 = vmatprep.subr.mxu0 0.0
    %421 = vmatpush2.msra.mxu0 0.0
    %422 = vmatprep.subr.mxu0 0.0
    %423 = vmatpush2.msra.mxu0 0.0
    %424 = vmatprep.subr.mxu0 0.0
    %425 = vmatpush2.msra.mxu0 0.0
    %426 = vmatprep.subr.mxu0 0.0
    %427 = vmatpush2.msra.mxu0 0.0
    %428 = vmatprep.subr.mxu0 0.0
    %429 = vmatpush2.msra.mxu0 0.0
    %430 = vmatprep.subr.mxu0 0.0
    %431 = vmatpush2.msra.mxu0 0.0
    %432 = vmatprep.subr.mxu0 0.0
    %433 = vmatpush2.msra.mxu0 0.0
    %434 = vmatprep.subr.mxu0 0.0
    %435 = vmatpush2.msra.mxu0 0.0
    %436 = vmatprep.subr.mxu0 0.0
    %437 = vmatpush2.msra.mxu0 0.0
    %438 = vmatprep.subr.mxu0 0.0
    %439 = vmatpush2.msra.mxu0 0.0
    %440 = vmatprep.subr.mxu0 0.0
    %441 = vmatpush2.msra.mxu0 0.0
    %442 = vmatprep.subr.mxu0 0.0
    %443 = vmatpush2.msra.mxu0 0.0
    %444 = vmatprep.subr.mxu0 0.0
    %445 = vmatpush2.msra.mxu0 0.0
    %446 = vmatprep.subr.mxu0 0.0
    %447 = vmatpush2.msra.mxu0 0.0
    %448 = vmatprep.mubr.f32.mxu0 0.0
    %449 = vmatmul.mubr.f32.gmra.mxu0 %v382
    %v450 = vpop.f32.mrf.mxu0
    %v451 = vadd.f32 0.0, %v450
    %v452 = vpop.f32.mrf.mxu0
    %453 = vdwg.mxu0
    %v454 = vld [vmem:[%s3 + $0x1] sm:$0x1]
    %v455 = vld [vmem:[%s3] sm:$0x1]
    %v456 = vsub.f32 %v454, %v455
    %s457 = sld [smem:[#allocation9 + $0x1]]
    %s458 = sld [smem:[#allocation9]]
    %s459 = ssub.f32 %s457, %s458
    %v460 = vlaneseq
    %v461 = vshrl.u32 %v460, 7
    %v462 = vsub.s32 0, %v461
    %v463 = vrot.slane %v456, %v462
    %v464 = vmul.f32 %v451, %v463
    %vm465 = vcmask 1045504
    %v466 = vsel %vm465, %v464, 0.0
    %467 = vadd.xlane.f32.xlu0 %v466
    %v468 = vpop.xlane.xlu0 %467
    %v469 = vstv %s459
    %v470 = vadd.f32 %v468, %v469
    %v471 = vmul.f32 %v377, %v470
    %v472 = vmax.f32 %v471, 0.0
    %v473 = vand.u32 2147483647, %v471
    %v474 = vsub.f32 0.0, %v473
    %v475 = vmul.f32 %v474, 1.442695
    %v476 = vpow.pop %v475
    %v477 = vadd.f32 %v476, 1.0
    %v478 = vlog2.pop %v477
    %v479 = vmul.f32 %v478, 0.6931472
    %v480 = vadd.f32 %v472, %v479
    %v481 = vmul.f32 %v480, %v379
    %vm482 = vcmask 5120
    %v483 = vsel %vm482, %v481, 0.0
    %484 = vadd.xlane.f32.xlu0 %v483
    %v485 = vpop.xlane.xlu0 %484
    %v486 = vrot.slane %v485, 4
    %v487 = vadd.f32 %v485, %v486
    %v488 = vrot.slane %v487, 2
    %v489 = vadd.f32 %v487, %v488
    %v490 = vrot.slane %v489, 1
    %v491 = vadd.f32 %v489, %v490
    %s492 = vtos %v491
    %v493 = vsel %vm482, %v379, 0.0
    %494 = vadd.xlane.f32.xlu0 %v493
    %v495 = vpop.xlane.xlu0 %494
    %v496 = vrot.slane %v495, 4
    %v497 = vadd.f32 %v495, %v496
    %v498 = vrot.slane %v497, 2
    %v499 = vadd.f32 %v497, %v498
    %v500 = vrot.slane %v499, 1
    %v501 = vadd.f32 %v499, %v500
    %s502 = vtos %v501
    %v503 = vstv %s502
    %v504 = vrcp.pop %v503
    %s505 = vtos %v504
    %s506 = smul.f32 %s492, %s505
    %s507 = scalar_lea.smem [#allocation14], 0
    %508 = sst [smem:[%s507]] %s506
    // Predicated region
    $region58: #{tpu_custom_call.1} parent=1 // pred_check
      _
    $region59: #{tpu_custom_call.1} parent=1 // pred_check_branch
      %510 = sbr.rel (0) target = $region61
    $region60: #{tpu_custom_call.1} parent=1 // pred_region
      %s512 = ssub.s32 16, 16
      %513 = vsyncadd [#allocation5], %s512
      %516 = dma.smem_to_hbm [#allocation14], 16, %s8, [#allocation5]
    $region61: #{tpu_custom_call.1} parent=1 // pred_fallthru
      _
    // Predicated region
    $region62: #{tpu_custom_call.1} parent=1 // pred_check
      _
    $region63: #{tpu_custom_call.1} parent=1 // pred_check_branch
      %518 = sbr.rel (0) target = $region65
    $region64: #{tpu_custom_call.1} parent=1 // pred_region
      %519 = dma.done [#allocation5], 16
    $region65: #{tpu_custom_call.1} parent=1 // pred_fallthru
      _
    %520 = sfence
    %521 = vsyncpa [#allocation3], 1
    %522 = vsyncpa [#allocation8], 1
    %523 = vsyncpa [#allocation4], 1
    %524 = vsyncpa [#allocation5], 1
    %525 = vsyncpa [#allocation6], 1
    %526 = vsyncpa [#allocation12], 1

</llo_original>
